<compile_context>
chip_gen: v7x
topology: tpu7x:2x2x1
jax: 0.10.0
libtpu: 0.0.40
codegen_flags: <defaults>
</compile_context>

<pallas_src>
import jax
import jax.numpy as jnp
from jax.experimental import pallas as pl
from jax.experimental.pallas import tpu as pltpu


NEG_SLOPE = 0.01  # nn.LeakyReLU default


def _leaky_relu(x):
    # max(x, 0.01*x) == LeakyReLU(0.01) exactly (mul+max instead of cmp+mul+sel).
    return jnp.maximum(x, NEG_SLOPE * x)


def _round_up(a, b):
    return ((a + b - 1) // b) * b


def conv_fcn_kernel(x_ref,
                    w1_ref, b1_ref,
                    w2_ref, b2_ref,
                    w3_ref, b3_ref,
                    w4_ref, b4_ref,
                    w5_ref, b5_ref,
                    o_ref):
    # x_ref: (C_in, tm) channels-major pixel tile (f32, VMEM).
    # w1..w3: bf16 (Cout, Cin) VMEM; b1..b3: f32 (Cout, 1) VMEM.
    # w4, b4, w5, b5: tiny f32 tables in SMEM (scalar reads).

    # ---- layers 1..3 on the MXU: bf16 operands, f32 accumulation ----
    h = x_ref[...].astype(jnp.bfloat16)                                   # (Cin, tm)
    h = jnp.dot(w1_ref[...], h, preferred_element_type=jnp.float32) + b1_ref[...]
    h = _leaky_relu(h)
    h = jnp.dot(w2_ref[...], h.astype(jnp.bfloat16),
                preferred_element_type=jnp.float32) + b2_ref[...]
    h = _leaky_relu(h)
    h = jnp.dot(w3_ref[...], h.astype(jnp.bfloat16),
                preferred_element_type=jnp.float32) + b3_ref[...]
    h3 = _leaky_relu(h)                                                    # (L, tm) f32

    # ---- layers 4..5 on the VPU (tiny matmuls: (2,L) and (out_dim,2)) ----
    l_dim = w4_ref.shape[1]       # L
    c4out = w4_ref.shape[0]       # 2
    c5out = w5_ref.shape[0]       # out_dim

    h3_rows = [h3[c:c + 1, :] for c in range(l_dim)]                       # (1, tm) each
    h4_rows = []
    for o in range(c4out):
        acc = w4_ref[o, 0] * h3_rows[0]
        for c in range(1, l_dim):
            acc = acc + w4_ref[o, c] * h3_rows[c]
        acc = acc + b4_ref[o]
        h4_rows.append(_leaky_relu(acc))

    out_rows = []
    for o in range(c5out):
        acc = w5_ref[o, 0] * h4_rows[0]
        for c in range(1, c4out):
            acc = acc + w5_ref[o, c] * h4_rows[c]
        acc = acc + b5_ref[o]          # final conv: no activation
        out_rows.append(acc)

    o_ref[...] = jnp.concatenate(out_rows, axis=0).astype(o_ref.dtype)


def _prepare_params(params):
    """params: list of 5 (w:(Cout,Cin), b:(Cout,)).

    Layers 1..3 -> (bf16 weight, f32 (Cout,1) bias) for the MXU path.
    Layers 4..5 -> (f32 weight, f32 bias) kept exact for the VPU/SMEM path.
    """
    assert len(params) == 5
    mxu = [(w.astype(jnp.bfloat16), b.astype(jnp.float32).reshape(-1, 1))
           for (w, b) in params[:3]]
    vpu = [(w.astype(jnp.float32), b.astype(jnp.float32))
           for (w, b) in params[3:]]
    return mxu, vpu


def conv_fcn_forward(x_nchw, params, *, tm=2048):
    """x_nchw: (N, C, H, W) float32.  params: list of (w:(Cout,Cin), b:(Cout,))."""
    N, C, H, W = x_nchw.shape
    out_dim = params[-1][0].shape[0]
    P = H * W

    # Pixel tile: multiple of 128, capped at the 128-rounded pixel count.
    P128 = _round_up(P, 128)
    tm_eff = min(max(128, (tm // 128) * 128), P128)
    # v7x has 2 TensorCores: make sure the parallel grid has >= 2 tiles.
    if N * (_round_up(P128, tm_eff) // tm_eff) < 2 and P128 >= 256:
        tm_eff = max(128, ((P128 // 2) // 128) * 128)
    P_pad = _round_up(P, tm_eff)

    # NCHW -> (N, C, P): pure reshape, no transpose / extra HBM pass.
    x = x_nchw.reshape(N, C, P)
    if P_pad != P:
        x = jnp.pad(x, ((0, 0), (0, 0), (0, P_pad - P)))
    # TODO(synk): on v5e, optionally store x as bf16 in HBM to halve input DMA.

    mxu, vpu = _prepare_params(params)
    flat_params, param_specs = [], []
    for w, b in mxu:
        flat_params += [w, b]
        param_specs += [pl.BlockSpec(w.shape, lambda n, i: (0, 0)),
                        pl.BlockSpec(b.shape, lambda n, i: (0, 0))]
    for w, b in vpu:
        flat_params += [w, b]
        param_specs += [pl.BlockSpec(memory_space=pltpu.MemorySpace.SMEM),
                        pl.BlockSpec(memory_space=pltpu.MemorySpace.SMEM)]

    grid = (N, P_pad // tm_eff)

    dims = [C] + [w.shape[0] for w, _ in params]
    flops = 2 * N * P_pad * sum(dims[i] * dims[i + 1] for i in range(5))
    bytes_accessed = (4 * int(x.size) + 4 * N * P_pad * out_dim
                      + sum(int(w.size) * w.dtype.itemsize
                            + int(b.size) * b.dtype.itemsize
                            for w, b in mxu + vpu))

    out = pl.pallas_call(
        conv_fcn_kernel,
        out_shape=jax.ShapeDtypeStruct((N, out_dim, P_pad), jnp.float32),
        grid_spec=pltpu.PrefetchScalarGridSpec(
            num_scalar_prefetch=0,
            grid=grid,
            in_specs=[pl.BlockSpec((None, C, tm_eff), lambda n, i: (n, 0, i))]
                     + param_specs,
            out_specs=pl.BlockSpec((None, out_dim, tm_eff), lambda n, i: (n, 0, i)),
        ),
        compiler_params=pltpu.CompilerParams(
            dimension_semantics=("parallel", "parallel")),
        cost_estimate=pl.CostEstimate(flops=flops, transcendentals=0,
                                      bytes_accessed=int(bytes_accessed)),
    )(x, *flat_params)

    if P_pad != P:
        out = out[:, :, :P]
    # (N, out_dim, P) -> NCHW: pure reshape.
    return out.reshape(N, out_dim, H, W)


def init_params(key, L, out_dim):
    """Deterministic init matching ConvFcn's Conv2d shapes.

    Conv2d weight (Cout, Cin, 1, 1) stored as (Cout, Cin); bias as (Cout,).
    """
    dims = [4 * L + 2, 4 * L, 2 * L, L, 2, out_dim]
    params = []
    for idx in range(5):
        cin, cout = dims[idx], dims[idx + 1]
        key, kw, kb = jax.random.split(key, 3)
        bound = 1.0 / jnp.sqrt(cin)  # PyTorch-style uniform bound (fan_in = cin)
        w = jax.random.uniform(kw, (cout, cin), jnp.float32, -bound, bound)
        b = jax.random.uniform(kb, (cout,), jnp.float32, -bound, bound)
        params.append((w, b))
    return params


def reference_forward(x_nchw, params):
    """Pure-JAX f32 reference of the same computation."""
    N, C, H, W = x_nchw.shape
    h = x_nchw.reshape(N, C, H * W)
    for i, (w, b) in enumerate(params):
        h = jnp.einsum('oc,ncp->nop', w, h,
                       precision=jax.lax.Precision.HIGHEST) + b[None, :, None]
        if i < len(params) - 1:
            h = _leaky_relu(h)
    out_dim = params[-1][0].shape[0]
    return h.reshape(N, out_dim, H, W)


if __name__ == "__main__":
    L = 8
    out_dim = 2
    N, H, W = 2, 16, 16
    Cin = 4 * L + 2  # 34

    key = jax.random.PRNGKey(0)
    key, kx = jax.random.split(key)
    x = jax.random.normal(kx, (N, Cin, H, W), jnp.float32)

    params = init_params(jax.random.PRNGKey(0), L, out_dim)

    y = jax.block_until_ready(conv_fcn_forward(x, params, tm=2048))
    y_ref = reference_forward(x, params)

    assert y.shape == (N, out_dim, H, W)
    # bf16 MXU operands with f32 accumulation -> relaxed tolerance vs f32 ref.
    max_err = float(jnp.max(jnp.abs(y - y_ref)))
    assert jnp.allclose(y, y_ref, atol=2e-2, rtol=2e-2), max_err

    print("KERNEL_OK")
</pallas_src>

<mosaic_0001>
module attributes {stable_mosaic.version = 11 : i64} {
  func.func @conv_fcn_kernel(%arg0: i32, %arg1: i32, %arg2: memref<1x34x256xf32, #tpu.memory_space<vmem>>, %arg3: memref<32x34xbf16, #tpu.memory_space<vmem>>, %arg4: memref<32x1xf32, #tpu.memory_space<vmem>>, %arg5: memref<16x32xbf16, #tpu.memory_space<vmem>>, %arg6: memref<16x1xf32, #tpu.memory_space<vmem>>, %arg7: memref<8x16xbf16, #tpu.memory_space<vmem>>, %arg8: memref<8x1xf32, #tpu.memory_space<vmem>>, %arg9: memref<2x8xf32, #tpu.memory_space<smem>>, %arg10: memref<2xf32, #tpu.memory_space<smem>>, %arg11: memref<2x2xf32, #tpu.memory_space<smem>>, %arg12: memref<2xf32, #tpu.memory_space<smem>>, %arg13: memref<1x2x256xf32, #tpu.memory_space<vmem>>) attributes {dimension_semantics = [#tpu.dimension_semantics<parallel>, #tpu.dimension_semantics<parallel>], iteration_bounds = array<i64: 2, 1>, scalar_prefetch = 0 : i64, scratch_operands = 0 : i64, tpu.core_type = #tpu.core_type<tc>, window_params = [{transform_indices = @transform_0, window_bounds = array<i64: 1, 34, 256>}, {pipeline_mode = #tpu.pipeline_mode<synchronous>, transform_indices = @transform_1, window_bounds = array<i64: 32, 34>}, {pipeline_mode = #tpu.pipeline_mode<synchronous>, transform_indices = @transform_2, window_bounds = array<i64: 32, 1>}, {pipeline_mode = #tpu.pipeline_mode<synchronous>, transform_indices = @transform_3, window_bounds = array<i64: 16, 32>}, {pipeline_mode = #tpu.pipeline_mode<synchronous>, transform_indices = @transform_4, window_bounds = array<i64: 16, 1>}, {pipeline_mode = #tpu.pipeline_mode<synchronous>, transform_indices = @transform_5, window_bounds = array<i64: 8, 16>}, {pipeline_mode = #tpu.pipeline_mode<synchronous>, transform_indices = @transform_6, window_bounds = array<i64: 8, 1>}, {transform_indices = @transform_7, window_bounds = array<i64: 2, 8>}, {transform_indices = @transform_8, window_bounds = array<i64: 2>}, {transform_indices = @transform_9, window_bounds = array<i64: 2, 2>}, {transform_indices = @transform_10, window_bounds = array<i64: 2>}, {transform_indices = @transform_11, window_bounds = array<i64: 1, 2, 256>}]} {
    %c0 = arith.constant 0 : index
    %c0_0 = arith.constant 0 : index
    %c0_1 = arith.constant 0 : index
    %0 = vector.load %arg2[%c0, %c0_0, %c0_1] : memref<1x34x256xf32, #tpu.memory_space<vmem>>, vector<1x34x256xf32>
    %1 = vector.shape_cast %0 : vector<1x34x256xf32> to vector<34x256xf32>
    %2 = arith.truncf %1 : vector<34x256xf32> to vector<34x256xbf16>
    %c0_2 = arith.constant 0 : index
    %c0_3 = arith.constant 0 : index
    %3 = vector.load %arg3[%c0_2, %c0_3] : memref<32x34xbf16, #tpu.memory_space<vmem>>, vector<32x34xbf16>
    %cst = arith.constant dense<0.000000e+00> : vector<32x256xf32>
    %4 = tpu.matmul %3, %2, %cst {dimension_numbers = #tpu.dot_dimension_numbers<[1], [0], [0], [1], [0, 0, 1, 1], [], []>} : vector<32x34xbf16>, vector<34x256xbf16>, vector<32x256xf32> -> vector<32x256xf32>
    %c0_4 = arith.constant 0 : index
    %c0_5 = arith.constant 0 : index
    %5 = vector.load %arg4[%c0_4, %c0_5] : memref<32x1xf32, #tpu.memory_space<vmem>>, vector<32x1xf32>
    %6 = vector.broadcast %5 : vector<32x1xf32> to vector<32x256xf32>
    %7 = arith.addf %4, %6 : vector<32x256xf32>
    %cst_6 = arith.constant 0.00999999977 : f32
    %8 = vector.broadcast %cst_6 : f32 to vector<32x256xf32>
    %9 = arith.mulf %8, %7 : vector<32x256xf32>
    %10 = arith.maximumf %7, %9 : vector<32x256xf32>
    %c0_7 = arith.constant 0 : index
    %c0_8 = arith.constant 0 : index
    %11 = vector.load %arg5[%c0_7, %c0_8] : memref<16x32xbf16, #tpu.memory_space<vmem>>, vector<16x32xbf16>
    %12 = arith.truncf %10 : vector<32x256xf32> to vector<32x256xbf16>
    %cst_9 = arith.constant dense<0.000000e+00> : vector<16x256xf32>
    %13 = tpu.matmul %11, %12, %cst_9 {dimension_numbers = #tpu.dot_dimension_numbers<[1], [0], [0], [1], [0, 0, 1, 1], [], []>} : vector<16x32xbf16>, vector<32x256xbf16>, vector<16x256xf32> -> vector<16x256xf32>
    %c0_10 = arith.constant 0 : index
    %c0_11 = arith.constant 0 : index
    %14 = vector.load %arg6[%c0_10, %c0_11] : memref<16x1xf32, #tpu.memory_space<vmem>>, vector<16x1xf32>
    %15 = vector.broadcast %14 : vector<16x1xf32> to vector<16x256xf32>
    %16 = arith.addf %13, %15 : vector<16x256xf32>
    %cst_12 = arith.constant 0.00999999977 : f32
    %17 = vector.broadcast %cst_12 : f32 to vector<16x256xf32>
    %18 = arith.mulf %17, %16 : vector<16x256xf32>
    %19 = arith.maximumf %16, %18 : vector<16x256xf32>
    %c0_13 = arith.constant 0 : index
    %c0_14 = arith.constant 0 : index
    %20 = vector.load %arg7[%c0_13, %c0_14] : memref<8x16xbf16, #tpu.memory_space<vmem>>, vector<8x16xbf16>
    %21 = arith.truncf %19 : vector<16x256xf32> to vector<16x256xbf16>
    %cst_15 = arith.constant dense<0.000000e+00> : vector<8x256xf32>
    %22 = tpu.matmul %20, %21, %cst_15 {dimension_numbers = #tpu.dot_dimension_numbers<[1], [0], [0], [1], [0, 0, 1, 1], [], []>} : vector<8x16xbf16>, vector<16x256xbf16>, vector<8x256xf32> -> vector<8x256xf32>
    %c0_16 = arith.constant 0 : index
    %c0_17 = arith.constant 0 : index
    %23 = vector.load %arg8[%c0_16, %c0_17] : memref<8x1xf32, #tpu.memory_space<vmem>>, vector<8x1xf32>
    %24 = vector.broadcast %23 : vector<8x1xf32> to vector<8x256xf32>
    %25 = arith.addf %22, %24 : vector<8x256xf32>
    %cst_18 = arith.constant 0.00999999977 : f32
    %26 = vector.broadcast %cst_18 : f32 to vector<8x256xf32>
    %27 = arith.mulf %26, %25 : vector<8x256xf32>
    %28 = arith.maximumf %25, %27 : vector<8x256xf32>
    %29 = vector.extract_strided_slice %28 {offsets = [0, 0], sizes = [1, 256], strides = [1, 1]} : vector<8x256xf32> to vector<1x256xf32>
    %30 = vector.extract_strided_slice %28 {offsets = [1, 0], sizes = [1, 256], strides = [1, 1]} : vector<8x256xf32> to vector<1x256xf32>
    %31 = vector.extract_strided_slice %28 {offsets = [2, 0], sizes = [1, 256], strides = [1, 1]} : vector<8x256xf32> to vector<1x256xf32>
    %32 = vector.extract_strided_slice %28 {offsets = [3, 0], sizes = [1, 256], strides = [1, 1]} : vector<8x256xf32> to vector<1x256xf32>
    %33 = vector.extract_strided_slice %28 {offsets = [4, 0], sizes = [1, 256], strides = [1, 1]} : vector<8x256xf32> to vector<1x256xf32>
    %34 = vector.extract_strided_slice %28 {offsets = [5, 0], sizes = [1, 256], strides = [1, 1]} : vector<8x256xf32> to vector<1x256xf32>
    %35 = vector.extract_strided_slice %28 {offsets = [6, 0], sizes = [1, 256], strides = [1, 1]} : vector<8x256xf32> to vector<1x256xf32>
    %36 = vector.extract_strided_slice %28 {offsets = [7, 0], sizes = [1, 256], strides = [1, 1]} : vector<8x256xf32> to vector<1x256xf32>
    %c0_19 = arith.constant 0 : index
    %c0_20 = arith.constant 0 : index
    %37 = memref.load %arg9[%c0_19, %c0_20] : memref<2x8xf32, #tpu.memory_space<smem>>
    %38 = vector.broadcast %37 : f32 to vector<1x256xf32>
    %39 = arith.mulf %38, %29 : vector<1x256xf32>
    %c0_21 = arith.constant 0 : index
    %c1 = arith.constant 1 : index
    %40 = memref.load %arg9[%c0_21, %c1] : memref<2x8xf32, #tpu.memory_space<smem>>
    %41 = vector.broadcast %40 : f32 to vector<1x256xf32>
    %42 = arith.mulf %41, %30 : vector<1x256xf32>
    %43 = arith.addf %39, %42 : vector<1x256xf32>
    %c0_22 = arith.constant 0 : index
    %c2 = arith.constant 2 : index
    %44 = memref.load %arg9[%c0_22, %c2] : memref<2x8xf32, #tpu.memory_space<smem>>
    %45 = vector.broadcast %44 : f32 to vector<1x256xf32>
    %46 = arith.mulf %45, %31 : vector<1x256xf32>
    %47 = arith.addf %43, %46 : vector<1x256xf32>
    %c0_23 = arith.constant 0 : index
    %c3 = arith.constant 3 : index
    %48 = memref.load %arg9[%c0_23, %c3] : memref<2x8xf32, #tpu.memory_space<smem>>
    %49 = vector.broadcast %48 : f32 to vector<1x256xf32>
    %50 = arith.mulf %49, %32 : vector<1x256xf32>
    %51 = arith.addf %47, %50 : vector<1x256xf32>
    %c0_24 = arith.constant 0 : index
    %c4 = arith.constant 4 : index
    %52 = memref.load %arg9[%c0_24, %c4] : memref<2x8xf32, #tpu.memory_space<smem>>
    %53 = vector.broadcast %52 : f32 to vector<1x256xf32>
    %54 = arith.mulf %53, %33 : vector<1x256xf32>
    %55 = arith.addf %51, %54 : vector<1x256xf32>
    %c0_25 = arith.constant 0 : index
    %c5 = arith.constant 5 : index
    %56 = memref.load %arg9[%c0_25, %c5] : memref<2x8xf32, #tpu.memory_space<smem>>
    %57 = vector.broadcast %56 : f32 to vector<1x256xf32>
    %58 = arith.mulf %57, %34 : vector<1x256xf32>
    %59 = arith.addf %55, %58 : vector<1x256xf32>
    %c0_26 = arith.constant 0 : index
    %c6 = arith.constant 6 : index
    %60 = memref.load %arg9[%c0_26, %c6] : memref<2x8xf32, #tpu.memory_space<smem>>
    %61 = vector.broadcast %60 : f32 to vector<1x256xf32>
    %62 = arith.mulf %61, %35 : vector<1x256xf32>
    %63 = arith.addf %59, %62 : vector<1x256xf32>
    %c0_27 = arith.constant 0 : index
    %c7 = arith.constant 7 : index
    %64 = memref.load %arg9[%c0_27, %c7] : memref<2x8xf32, #tpu.memory_space<smem>>
    %65 = vector.broadcast %64 : f32 to vector<1x256xf32>
    %66 = arith.mulf %65, %36 : vector<1x256xf32>
    %67 = arith.addf %63, %66 : vector<1x256xf32>
    %c0_28 = arith.constant 0 : index
    %68 = memref.load %arg10[%c0_28] : memref<2xf32, #tpu.memory_space<smem>>
    %69 = vector.broadcast %68 : f32 to vector<1x256xf32>
    %70 = arith.addf %67, %69 : vector<1x256xf32>
    %cst_29 = arith.constant 0.00999999977 : f32
    %71 = vector.broadcast %cst_29 : f32 to vector<1x256xf32>
    %72 = arith.mulf %71, %70 : vector<1x256xf32>
    %73 = arith.maximumf %70, %72 : vector<1x256xf32>
    %c1_30 = arith.constant 1 : index
    %c0_31 = arith.constant 0 : index
    %74 = memref.load %arg9[%c1_30, %c0_31] : memref<2x8xf32, #tpu.memory_space<smem>>
    %75 = vector.broadcast %74 : f32 to vector<1x256xf32>
    %76 = arith.mulf %75, %29 : vector<1x256xf32>
    %c1_32 = arith.constant 1 : index
    %c1_33 = arith.constant 1 : index
    %77 = memref.load %arg9[%c1_32, %c1_33] : memref<2x8xf32, #tpu.memory_space<smem>>
    %78 = vector.broadcast %77 : f32 to vector<1x256xf32>
    %79 = arith.mulf %78, %30 : vector<1x256xf32>
    %80 = arith.addf %76, %79 : vector<1x256xf32>
    %c1_34 = arith.constant 1 : index
    %c2_35 = arith.constant 2 : index
    %81 = memref.load %arg9[%c1_34, %c2_35] : memref<2x8xf32, #tpu.memory_space<smem>>
    %82 = vector.broadcast %81 : f32 to vector<1x256xf32>
    %83 = arith.mulf %82, %31 : vector<1x256xf32>
    %84 = arith.addf %80, %83 : vector<1x256xf32>
    %c1_36 = arith.constant 1 : index
    %c3_37 = arith.constant 3 : index
    %85 = memref.load %arg9[%c1_36, %c3_37] : memref<2x8xf32, #tpu.memory_space<smem>>
    %86 = vector.broadcast %85 : f32 to vector<1x256xf32>
    %87 = arith.mulf %86, %32 : vector<1x256xf32>
    %88 = arith.addf %84, %87 : vector<1x256xf32>
    %c1_38 = arith.constant 1 : index
    %c4_39 = arith.constant 4 : index
    %89 = memref.load %arg9[%c1_38, %c4_39] : memref<2x8xf32, #tpu.memory_space<smem>>
    %90 = vector.broadcast %89 : f32 to vector<1x256xf32>
    %91 = arith.mulf %90, %33 : vector<1x256xf32>
    %92 = arith.addf %88, %91 : vector<1x256xf32>
    %c1_40 = arith.constant 1 : index
    %c5_41 = arith.constant 5 : index
    %93 = memref.load %arg9[%c1_40, %c5_41] : memref<2x8xf32, #tpu.memory_space<smem>>
    %94 = vector.broadcast %93 : f32 to vector<1x256xf32>
    %95 = arith.mulf %94, %34 : vector<1x256xf32>
    %96 = arith.addf %92, %95 : vector<1x256xf32>
    %c1_42 = arith.constant 1 : index
    %c6_43 = arith.constant 6 : index
    %97 = memref.load %arg9[%c1_42, %c6_43] : memref<2x8xf32, #tpu.memory_space<smem>>
    %98 = vector.broadcast %97 : f32 to vector<1x256xf32>
    %99 = arith.mulf %98, %35 : vector<1x256xf32>
    %100 = arith.addf %96, %99 : vector<1x256xf32>
    %c1_44 = arith.constant 1 : index
    %c7_45 = arith.constant 7 : index
    %101 = memref.load %arg9[%c1_44, %c7_45] : memref<2x8xf32, #tpu.memory_space<smem>>
    %102 = vector.broadcast %101 : f32 to vector<1x256xf32>
    %103 = arith.mulf %102, %36 : vector<1x256xf32>
    %104 = arith.addf %100, %103 : vector<1x256xf32>
    %c1_46 = arith.constant 1 : index
    %105 = memref.load %arg10[%c1_46] : memref<2xf32, #tpu.memory_space<smem>>
    %106 = vector.broadcast %105 : f32 to vector<1x256xf32>
    %107 = arith.addf %104, %106 : vector<1x256xf32>
    %cst_47 = arith.constant 0.00999999977 : f32
    %108 = vector.broadcast %cst_47 : f32 to vector<1x256xf32>
    %109 = arith.mulf %108, %107 : vector<1x256xf32>
    %110 = arith.maximumf %107, %109 : vector<1x256xf32>
    %c0_48 = arith.constant 0 : index
    %c0_49 = arith.constant 0 : index
    %111 = memref.load %arg11[%c0_48, %c0_49] : memref<2x2xf32, #tpu.memory_space<smem>>
    %112 = vector.broadcast %111 : f32 to vector<1x256xf32>
    %113 = arith.mulf %112, %73 : vector<1x256xf32>
    %c0_50 = arith.constant 0 : index
    %c1_51 = arith.constant 1 : index
    %114 = memref.load %arg11[%c0_50, %c1_51] : memref<2x2xf32, #tpu.memory_space<smem>>
    %115 = vector.broadcast %114 : f32 to vector<1x256xf32>
    %116 = arith.mulf %115, %110 : vector<1x256xf32>
    %117 = arith.addf %113, %116 : vector<1x256xf32>
    %c0_52 = arith.constant 0 : index
    %118 = memref.load %arg12[%c0_52] : memref<2xf32, #tpu.memory_space<smem>>
    %119 = vector.broadcast %118 : f32 to vector<1x256xf32>
    %120 = arith.addf %117, %119 : vector<1x256xf32>
    %c1_53 = arith.constant 1 : index
    %c0_54 = arith.constant 0 : index
    %121 = memref.load %arg11[%c1_53, %c0_54] : memref<2x2xf32, #tpu.memory_space<smem>>
    %122 = vector.broadcast %121 : f32 to vector<1x256xf32>
    %123 = arith.mulf %122, %73 : vector<1x256xf32>
    %c1_55 = arith.constant 1 : index
    %c1_56 = arith.constant 1 : index
    %124 = memref.load %arg11[%c1_55, %c1_56] : memref<2x2xf32, #tpu.memory_space<smem>>
    %125 = vector.broadcast %124 : f32 to vector<1x256xf32>
    %126 = arith.mulf %125, %110 : vector<1x256xf32>
    %127 = arith.addf %123, %126 : vector<1x256xf32>
    %c1_57 = arith.constant 1 : index
    %128 = memref.load %arg12[%c1_57] : memref<2xf32, #tpu.memory_space<smem>>
    %129 = vector.broadcast %128 : f32 to vector<1x256xf32>
    %130 = arith.addf %127, %129 : vector<1x256xf32>
    %131 = tpu.concatenate %120, %130 in 0 : vector<1x256xf32>, vector<1x256xf32> -> vector<2x256xf32>
    %c0_58 = arith.constant 0 : index
    %c0_59 = arith.constant 0 : index
    %c0_60 = arith.constant 0 : index
    %132 = vector.load %arg13[%c0_58, %c0_59, %c0_60] : memref<1x2x256xf32, #tpu.memory_space<vmem>>, vector<1x2x256xf32>
    %133 = vector.shape_cast %132 : vector<1x2x256xf32> to vector<2x256xf32>
    %134 = vector.shape_cast %131 : vector<2x256xf32> to vector<1x2x256xf32>
    tpu.vector_store %arg13[%c0_58, %c0_59, %c0_60], %134 {strides = array<i32>} : memref<1x2x256xf32, #tpu.memory_space<vmem>>, vector<1x2x256xf32>,
    return
  }
  func.func @transform_0(%arg0: i32, %arg1: i32) -> (i32, i32, i32) {
    %c0_i32 = arith.constant 0 : i32
    %c0_i32_0 = arith.constant 0 : i32
    return %arg0, %c0_i32, %arg1 : i32, i32, i32
  }
  func.func @transform_1(%arg0: i32, %arg1: i32) -> (i32, i32) {
    %c0_i32 = arith.constant 0 : i32
    %c0_i32_0 = arith.constant 0 : i32
    %c0_i32_1 = arith.constant 0 : i32
    return %c0_i32, %c0_i32_0 : i32, i32
  }
  func.func @transform_2(%arg0: i32, %arg1: i32) -> (i32, i32) {
    %c0_i32 = arith.constant 0 : i32
    %c0_i32_0 = arith.constant 0 : i32
    %c0_i32_1 = arith.constant 0 : i32
    return %c0_i32, %c0_i32_0 : i32, i32
  }
  func.func @transform_3(%arg0: i32, %arg1: i32) -> (i32, i32) {
    %c0_i32 = arith.constant 0 : i32
    %c0_i32_0 = arith.constant 0 : i32
    %c0_i32_1 = arith.constant 0 : i32
    return %c0_i32, %c0_i32_0 : i32, i32
  }
  func.func @transform_4(%arg0: i32, %arg1: i32) -> (i32, i32) {
    %c0_i32 = arith.constant 0 : i32
    %c0_i32_0 = arith.constant 0 : i32
    %c0_i32_1 = arith.constant 0 : i32
    return %c0_i32, %c0_i32_0 : i32, i32
  }
  func.func @transform_5(%arg0: i32, %arg1: i32) -> (i32, i32) {
    %c0_i32 = arith.constant 0 : i32
    %c0_i32_0 = arith.constant 0 : i32
    %c0_i32_1 = arith.constant 0 : i32
    return %c0_i32, %c0_i32_0 : i32, i32
  }
  func.func @transform_6(%arg0: i32, %arg1: i32) -> (i32, i32) {
    %c0_i32 = arith.constant 0 : i32
    %c0_i32_0 = arith.constant 0 : i32
    %c0_i32_1 = arith.constant 0 : i32
    return %c0_i32, %c0_i32_0 : i32, i32
  }
  func.func @transform_7(%arg0: i32, %arg1: i32) -> (i32, i32) {
    %c0_i32 = arith.constant 0 : i32
    %c0_i32_0 = arith.constant 0 : i32
    %c0_i32_1 = arith.constant 0 : i32
    return %c0_i32, %c0_i32_0 : i32, i32
  }
  func.func @transform_8(%arg0: i32, %arg1: i32) -> i32 {
    %c0_i32 = arith.constant 0 : i32
    %c0_i32_0 = arith.constant 0 : i32
    return %c0_i32 : i32
  }
  func.func @transform_9(%arg0: i32, %arg1: i32) -> (i32, i32) {
    %c0_i32 = arith.constant 0 : i32
    %c0_i32_0 = arith.constant 0 : i32
    %c0_i32_1 = arith.constant 0 : i32
    return %c0_i32, %c0_i32_0 : i32, i32
  }
  func.func @transform_10(%arg0: i32, %arg1: i32) -> i32 {
    %c0_i32 = arith.constant 0 : i32
    %c0_i32_0 = arith.constant 0 : i32
    return %c0_i32 : i32
  }
  func.func @transform_11(%arg0: i32, %arg1: i32) -> (i32, i32, i32) {
    %c0_i32 = arith.constant 0 : i32
    %c0_i32_0 = arith.constant 0 : i32
    return %arg0, %c0_i32, %arg1 : i32, i32, i32
  }
}

</mosaic_0001>

<llo_original>
// kernel: tpu_custom_call.1
$region0: #{tpu_custom_call.1}
  #allocation0 [shape = 'u32[]', space=smem, size = 0x4, offset = 0x4, fixed_abs, tag = 'smem constant byte address 0x4 - core index']
  #allocation1 [shape = 'u32[144,128]{1,0:T(1,128)}', space=vmem, size = 0x12000, scoped, tag = 'internal scratch']
  %s0 = inlined_call_operand.vmem [shape: f32[2,34,256], index: 0, kind: input, shape index: {}]
  %s1 = inlined_call_operand.vmem [shape: bf16[32,34], index: 1, kind: input, shape index: {}]
  %s2 = inlined_call_operand.vmem [shape: f32[32,1], index: 2, kind: input, shape index: {}]
  %s3 = inlined_call_operand.vmem [shape: bf16[16,32], index: 3, kind: input, shape index: {}]
  %s4 = inlined_call_operand.vmem [shape: f32[16,1], index: 4, kind: input, shape index: {}]
  %s5 = inlined_call_operand.vmem [shape: bf16[8,16], index: 5, kind: input, shape index: {}]
  %s6 = inlined_call_operand.vmem [shape: f32[8,1], index: 6, kind: input, shape index: {}]
  %s7 = inlined_call_operand.vmem [shape: f32[2,8], index: 7, kind: input, shape index: {}]
  %s8 = inlined_call_operand.vmem [shape: f32[2], index: 8, kind: input, shape index: {}]
  %s9 = inlined_call_operand.vmem [shape: f32[2,2], index: 9, kind: input, shape index: {}]
  %s10 = inlined_call_operand.vmem [shape: f32[2], index: 10, kind: input, shape index: {}]
  %s11 = inlined_call_operand.hbm [shape: f32[2,2,256], index: 11, kind: output, shape index: {}]
  %s12 = sld [smem:[#allocation0]]
  $region93: #{tpu_custom_call.1} parent=0
    _
  %s14 = ssub.s32 1, %s12
  %s15 = scalar_select 0, %s14, %s12
  $region1: #{tpu_custom_call.1} parent=0
    #allocation2 [shape = 'u8[1024]{0}', space=smem, size = 0x400, scoped, tag = 'input window, operand 7, single buffered']
    #allocation3 [shape = 's32[2]{0}', space=sflag, size = 0x8, scoped, tag = 'scoped memory for tpu_custom_call.1']
    #allocation4 [shape = 's32[2]{0}', space=sflag, size = 0x8, scoped, tag = 'scoped memory for tpu_custom_call.1']
    #allocation5 [shape = 'u8[512]{0}', space=smem, size = 0x200, scoped, tag = 'input window, operand 8, single buffered']
    #allocation6 [shape = 's32[1]{0}', space=sflag, size = 0x4, scoped, tag = 'scoped memory for tpu_custom_call.1']
    #allocation7 [shape = 'u8[1024]{0}', space=smem, size = 0x400, scoped, tag = 'input window, operand 9, single buffered']
    #allocation8 [shape = 'u8[512]{0}', space=smem, size = 0x200, scoped, tag = 'input window, operand 10, single buffered']
    #allocation9 [shape = 's32[1]{0}', space=sflag, size = 0x4, scoped, tag = 'scoped memory for tpu_custom_call.1']
    #allocation10 [shape = 'u8[4096]{0}', space=vmem, size = 0x1000, scoped, tag = 'output window, operand 0']
    %16 = vsyncpa [#allocation4], 0
    %17 = vsyncpa [#allocation6], 0
    %18 = vsyncpa [#allocation9], 0
    %19 = vsyncpa [#allocation3], 0
    %s20 = scalar_lea.sflag [#allocation3], 1
    %21 = vsyncpa %s20, 0
    loop: start=0, step=1, limit=4
    $region2: #{tpu_custom_call.1} parent=1 // loop_pre_header
      _
    $region3: #{tpu_custom_call.1} parent=1 // loop_header
      %s23 = sphi 0, %s27
      %p24 = scmp.ge.s32.totalorder %s23, 4
      %s30 = sphi 0, %s42
      %s31 = sphi 0, %s38
      %s32 = sphi 0, %s30
      %s33 = sphi 0, %s31
      %s34 = sphi 0, %s32
      %s35 = sphi 0, %s33
      %s47 = sphi 0, %s49
      %s50 = sphi 0, %s47
      %s51 = sphi 0, %s50
      %s67 = sphi 0, %s51
      %s71 = sphi 0, %s71
      %s73 = sphi 0, %s71
      %s74 = sphi 0, %s73
      %s88 = sphi 0, %s74
      %s92 = sphi 0, %s92
      %s94 = sphi 0, %s92
      %s95 = sphi 0, %s94
      %s109 = sphi 0, %s95
      %s113 = sphi 0, %s113
      %s115 = sphi 0, %s113
      %s116 = sphi 0, %s115
      %s130 = sphi 0, %s116
      %s134 = sphi 0, %s134
      %s136 = sphi 0, %s134
      %s137 = sphi 0, %s136
      %s151 = sphi 0, %s137
      %s155 = sphi 0, %s155
      %s157 = sphi 0, %s155
      %s158 = sphi 0, %s157
      %s172 = sphi 0, %s158
      %s176 = sphi 0, %s176
      %s178 = sphi 0, %s176
      %s179 = sphi 0, %s178
      %s193 = sphi 0, %s179
      %s197 = sphi 0, %s197
      %s199 = sphi 0, %s197
      %s200 = sphi 0, %s199
      %s214 = sphi 0, %s200
      %s218 = sphi 0, %s218
      %s220 = sphi 0, %s218
      %s221 = sphi 0, %s220
      %s235 = sphi 0, %s221
      %s239 = sphi 0, %s239
      %s241 = sphi 0, %s239
      %s242 = sphi 0, %s241
      %s256 = sphi 0, %s242
      %s260 = sphi 0, %s260
      %s262 = sphi 0, %s260
      %s263 = sphi 0, %s262
      %s277 = sphi 0, %s263
      %s285 = sphi 0, %s287
      %s288 = sphi 0, %s285
      %s289 = sphi 0, %s288
      %s305 = sphi 0, %s289
    $region4: #{tpu_custom_call.1} parent=1 // loop_header_branch
      %26 = sbr.rel (%p24) target = $region8
    $region5: #{tpu_custom_call.1} parent=1 // loop_body
      %s28 = ssub.s32 %s23, 1
      %s29 = ssub.s32 %s23, 2
      %s36 = sadd.s32 1, %s31
      %p37 = scmp.ge.s32.totalorder %s36, 1
      %s38 = scalar_select %p37, 0, %s36
      %s39 = sadd.s32 1, %s30
      %s40 = scalar_select %p37, %s39, %s30
      %p41 = scmp.ge.s32.totalorder %s40, 2
      %s42 = scalar_select %p41, 0, %s40
      %s43 = ssub.s32 %s30, %s42
      %s44 = ssub.s32 %s31, %s38
      %s45 = sor.u32 %s43, %s44
      %p46 = scmp.eq.s32.totalorder %s45, 0
      %s48 = sadd.s32 %s47, 1
      %s49 = scalar_select %p46, %s47, %s48
      %p52 = pneg %p46
      %p53 = scmp.eq.s32.totalorder %s23, 1
      %p54 = por %p52, %p53
      %p55 = scmp.ne.s32.totalorder %s47, %s50
      %p56 = scmp.eq.s32.totalorder %s23, 0
      %p57 = por %p55, %p56
      %p58 = scmp.ne.s32.totalorder %s47, %s50
      %p59 = scmp.eq.s32.totalorder %s28, 1
      %p60 = por %p58, %p59
      %p61 = scmp.ne.s32.totalorder %s50, %s51
      %p62 = scmp.eq.s32.totalorder %s28, 0
      %p63 = por %p61, %p62
      %p64 = scmp.ne.s32.totalorder %s50, %s51
      %p65 = scmp.eq.s32.totalorder %s29, 1
      %p66 = por %p64, %p65
      %p68 = scmp.ne.s32.totalorder %s51, %s67
      %p69 = scmp.eq.s32.totalorder %s29, 0
      %p70 = por %p68, %p69
      %s72 = sadd.s32 %s71, 1
      %p75 = scmp.eq.s32.totalorder %s23, 1
      %p76 = scmp.ne.s32.totalorder %s71, %s73
      %p77 = scmp.eq.s32.totalorder %s23, 0
      %p78 = por %p76, %p77
      %p79 = scmp.ne.s32.totalorder %s71, %s73
      %p80 = scmp.eq.s32.totalorder %s28, 1
      %p81 = por %p79, %p80
      %p82 = scmp.ne.s32.totalorder %s73, %s74
      %p83 = scmp.eq.s32.totalorder %s28, 0
      %p84 = por %p82, %p83
      %p85 = scmp.ne.s32.totalorder %s73, %s74
      %p86 = scmp.eq.s32.totalorder %s29, 1
      %p87 = por %p85, %p86
      %p89 = scmp.ne.s32.totalorder %s74, %s88
      %p90 = scmp.eq.s32.totalorder %s29, 0
      %p91 = por %p89, %p90
      %s93 = sadd.s32 %s92, 1
      %p96 = scmp.eq.s32.totalorder %s23, 1
      %p97 = scmp.ne.s32.totalorder %s92, %s94
      %p98 = scmp.eq.s32.totalorder %s23, 0
      %p99 = por %p97, %p98
      %p100 = scmp.ne.s32.totalorder %s92, %s94
      %p101 = scmp.eq.s32.totalorder %s28, 1
      %p102 = por %p100, %p101
      %p103 = scmp.ne.s32.totalorder %s94, %s95
      %p104 = scmp.eq.s32.totalorder %s28, 0
      %p105 = por %p103, %p104
      %p106 = scmp.ne.s32.totalorder %s94, %s95
      %p107 = scmp.eq.s32.totalorder %s29, 1
      %p108 = por %p106, %p107
      %p110 = scmp.ne.s32.totalorder %s95, %s109
      %p111 = scmp.eq.s32.totalorder %s29, 0
      %p112 = por %p110, %p111
      %s114 = sadd.s32 %s113, 1
      %p117 = scmp.eq.s32.totalorder %s23, 1
      %p118 = scmp.ne.s32.totalorder %s113, %s115
      %p119 = scmp.eq.s32.totalorder %s23, 0
      %p120 = por %p118, %p119
      %p121 = scmp.ne.s32.totalorder %s113, %s115
      %p122 = scmp.eq.s32.totalorder %s28, 1
      %p123 = por %p121, %p122
      %p124 = scmp.ne.s32.totalorder %s115, %s116
      %p125 = scmp.eq.s32.totalorder %s28, 0
      %p126 = por %p124, %p125
      %p127 = scmp.ne.s32.totalorder %s115, %s116
      %p128 = scmp.eq.s32.totalorder %s29, 1
      %p129 = por %p127, %p128
      %p131 = scmp.ne.s32.totalorder %s116, %s130
      %p132 = scmp.eq.s32.totalorder %s29, 0
      %p133 = por %p131, %p132
      %s135 = sadd.s32 %s134, 1
      %p138 = scmp.eq.s32.totalorder %s23, 1
      %p139 = scmp.ne.s32.totalorder %s134, %s136
      %p140 = scmp.eq.s32.totalorder %s23, 0
      %p141 = por %p139, %p140
      %p142 = scmp.ne.s32.totalorder %s134, %s136
      %p143 = scmp.eq.s32.totalorder %s28, 1
      %p144 = por %p142, %p143
      %p145 = scmp.ne.s32.totalorder %s136, %s137
      %p146 = scmp.eq.s32.totalorder %s28, 0
      %p147 = por %p145, %p146
      %p148 = scmp.ne.s32.totalorder %s136, %s137
      %p149 = scmp.eq.s32.totalorder %s29, 1
      %p150 = por %p148, %p149
      %p152 = scmp.ne.s32.totalorder %s137, %s151
      %p153 = scmp.eq.s32.totalorder %s29, 0
      %p154 = por %p152, %p153
      %s156 = sadd.s32 %s155, 1
      %p159 = scmp.eq.s32.totalorder %s23, 1
      %p160 = scmp.ne.s32.totalorder %s155, %s157
      %p161 = scmp.eq.s32.totalorder %s23, 0
      %p162 = por %p160, %p161
      %p163 = scmp.ne.s32.totalorder %s155, %s157
      %p164 = scmp.eq.s32.totalorder %s28, 1
      %p165 = por %p163, %p164
      %p166 = scmp.ne.s32.totalorder %s157, %s158
      %p167 = scmp.eq.s32.totalorder %s28, 0
      %p168 = por %p166, %p167
      %p169 = scmp.ne.s32.totalorder %s157, %s158
      %p170 = scmp.eq.s32.totalorder %s29, 1
      %p171 = por %p169, %p170
      %p173 = scmp.ne.s32.totalorder %s158, %s172
      %p174 = scmp.eq.s32.totalorder %s29, 0
      %p175 = por %p173, %p174
      %s177 = sadd.s32 %s176, 1
      %p180 = scmp.eq.s32.totalorder %s23, 1
      %p181 = scmp.ne.s32.totalorder %s176, %s178
      %p182 = scmp.eq.s32.totalorder %s23, 0
      %p183 = por %p181, %p182
      %p184 = scmp.ne.s32.totalorder %s176, %s178
      %p185 = scmp.eq.s32.totalorder %s28, 1
      %p186 = por %p184, %p185
      %p187 = scmp.ne.s32.totalorder %s178, %s179
      %p188 = scmp.eq.s32.totalorder %s28, 0
      %p189 = por %p187, %p188
      %p190 = scmp.ne.s32.totalorder %s178, %s179
      %p191 = scmp.eq.s32.totalorder %s29, 1
      %p192 = por %p190, %p191
      %p194 = scmp.ne.s32.totalorder %s179, %s193
      %p195 = scmp.eq.s32.totalorder %s29, 0
      %p196 = por %p194, %p195
      %s198 = sadd.s32 %s197, 1
      %p201 = scmp.eq.s32.totalorder %s23, 1
      %p202 = scmp.ne.s32.totalorder %s197, %s199
      %p203 = scmp.eq.s32.totalorder %s23, 0
      %p204 = por %p202, %p203
      %p205 = scmp.ne.s32.totalorder %s197, %s199
      %p206 = scmp.eq.s32.totalorder %s28, 1
      %p207 = por %p205, %p206
      %p208 = scmp.ne.s32.totalorder %s199, %s200
      %p209 = scmp.eq.s32.totalorder %s28, 0
      %p210 = por %p208, %p209
      %p211 = scmp.ne.s32.totalorder %s199, %s200
      %p212 = scmp.eq.s32.totalorder %s29, 1
      %p213 = por %p211, %p212
      %p215 = scmp.ne.s32.totalorder %s200, %s214
      %p216 = scmp.eq.s32.totalorder %s29, 0
      %p217 = por %p215, %p216
      %s219 = sadd.s32 %s218, 1
      %p222 = scmp.eq.s32.totalorder %s23, 1
      %p223 = scmp.ne.s32.totalorder %s218, %s220
      %p224 = scmp.eq.s32.totalorder %s23, 0
      %p225 = por %p223, %p224
      %p226 = scmp.ne.s32.totalorder %s218, %s220
      %p227 = scmp.eq.s32.totalorder %s28, 1
      %p228 = por %p226, %p227
      %p229 = scmp.ne.s32.totalorder %s220, %s221
      %p230 = scmp.eq.s32.totalorder %s28, 0
      %p231 = por %p229, %p230
      %p232 = scmp.ne.s32.totalorder %s220, %s221
      %p233 = scmp.eq.s32.totalorder %s29, 1
      %p234 = por %p232, %p233
      %p236 = scmp.ne.s32.totalorder %s221, %s235
      %p237 = scmp.eq.s32.totalorder %s29, 0
      %p238 = por %p236, %p237
      %s240 = sadd.s32 %s239, 1
      %p243 = scmp.eq.s32.totalorder %s23, 1
      %p244 = scmp.ne.s32.totalorder %s239, %s241
      %p245 = scmp.eq.s32.totalorder %s23, 0
      %p246 = por %p244, %p245
      %p247 = scmp.ne.s32.totalorder %s239, %s241
      %p248 = scmp.eq.s32.totalorder %s28, 1
      %p249 = por %p247, %p248
      %p250 = scmp.ne.s32.totalorder %s241, %s242
      %p251 = scmp.eq.s32.totalorder %s28, 0
      %p252 = por %p250, %p251
      %p253 = scmp.ne.s32.totalorder %s241, %s242
      %p254 = scmp.eq.s32.totalorder %s29, 1
      %p255 = por %p253, %p254
      %p257 = scmp.ne.s32.totalorder %s242, %s256
      %p258 = scmp.eq.s32.totalorder %s29, 0
      %p259 = por %p257, %p258
      %s261 = sadd.s32 %s260, 1
      %p264 = scmp.eq.s32.totalorder %s23, 1
      %p265 = scmp.ne.s32.totalorder %s260, %s262
      %p266 = scmp.eq.s32.totalorder %s23, 0
      %p267 = por %p265, %p266
      %p268 = scmp.ne.s32.totalorder %s260, %s262
      %p269 = scmp.eq.s32.totalorder %s28, 1
      %p270 = por %p268, %p269
      %p271 = scmp.ne.s32.totalorder %s262, %s263
      %p272 = scmp.eq.s32.totalorder %s28, 0
      %p273 = por %p271, %p272
      %p274 = scmp.ne.s32.totalorder %s262, %s263
      %p275 = scmp.eq.s32.totalorder %s29, 1
      %p276 = por %p274, %p275
      %p278 = scmp.ne.s32.totalorder %s263, %s277
      %p279 = scmp.eq.s32.totalorder %s29, 0
      %p280 = por %p278, %p279
      %s281 = ssub.s32 %s30, %s42
      %s282 = ssub.s32 %s31, %s38
      %s283 = sor.u32 %s281, %s282
      %p284 = scmp.eq.s32.totalorder %s283, 0
      %s286 = sadd.s32 %s285, 1
      %s287 = scalar_select %p284, %s285, %s286
      %p290 = pneg %p284
      %p291 = scmp.eq.s32.totalorder %s23, 1
      %p292 = por %p290, %p291
      %p293 = scmp.ne.s32.totalorder %s285, %s288
      %p294 = scmp.eq.s32.totalorder %s23, 0
      %p295 = por %p293, %p294
      %p296 = scmp.ne.s32.totalorder %s285, %s288
      %p297 = scmp.eq.s32.totalorder %s28, 1
      %p298 = por %p296, %p297
      %p299 = scmp.ne.s32.totalorder %s288, %s289
      %p300 = scmp.eq.s32.totalorder %s28, 0
      %p301 = por %p299, %p300
      %p302 = scmp.ne.s32.totalorder %s288, %s289
      %p303 = scmp.eq.s32.totalorder %s29, 1
      %p304 = por %p302, %p303
      %p306 = scmp.ne.s32.totalorder %s289, %s305
      %p307 = scmp.eq.s32.totalorder %s29, 0
      %p308 = por %p306, %p307
      %p309 = scmp.le.s32.totalorder 1, %s23
      %p310 = scmp.lt.s32.totalorder %s23, 3
      %p311 = pnand %p309, %p310
      %p312 = pneg %p311
      // Predicated region
      $region9: #{tpu_custom_call.1} parent=5 // pred_check
        _
      $region10: #{tpu_custom_call.1} parent=5 // pred_check_branch
        %314 = sbr.rel (%p311) target = $region12
      $region11: #{tpu_custom_call.1} parent=5 // pred_region
        %s315 = ssub.s32 %s23, 1
        // Predicated region
        $region13: #{tpu_custom_call.1} parent=11 // pred_check
          %p316 = pneg %p84
        $region14: #{tpu_custom_call.1} parent=11 // pred_check_branch
          %318 = sbr.rel (%p316) target = $region16
        $region15: #{tpu_custom_call.1} parent=11 // pred_region
          _
        $region16: #{tpu_custom_call.1} parent=11 // pred_fallthru
          _
        // Predicated region
        $region17: #{tpu_custom_call.1} parent=11 // pred_check
          %p319 = pneg %p105
        $region18: #{tpu_custom_call.1} parent=11 // pred_check_branch
          %321 = sbr.rel (%p319) target = $region20
        $region19: #{tpu_custom_call.1} parent=11 // pred_region
          _
        $region20: #{tpu_custom_call.1} parent=11 // pred_fallthru
          _
        // Predicated region
        $region21: #{tpu_custom_call.1} parent=11 // pred_check
          %p322 = pneg %p126
        $region22: #{tpu_custom_call.1} parent=11 // pred_check_branch
          %324 = sbr.rel (%p322) target = $region24
        $region23: #{tpu_custom_call.1} parent=11 // pred_region
          _
        $region24: #{tpu_custom_call.1} parent=11 // pred_fallthru
          _
        // Predicated region
        $region25: #{tpu_custom_call.1} parent=11 // pred_check
          %p325 = pneg %p147
        $region26: #{tpu_custom_call.1} parent=11 // pred_check_branch
          %327 = sbr.rel (%p325) target = $region28
        $region27: #{tpu_custom_call.1} parent=11 // pred_region
          _
        $region28: #{tpu_custom_call.1} parent=11 // pred_fallthru
          _
        // Predicated region
        $region29: #{tpu_custom_call.1} parent=11 // pred_check
          %p328 = pneg %p168
        $region30: #{tpu_custom_call.1} parent=11 // pred_check_branch
          %330 = sbr.rel (%p328) target = $region32
        $region31: #{tpu_custom_call.1} parent=11 // pred_region
          _
        $region32: #{tpu_custom_call.1} parent=11 // pred_fallthru
          _
        // Predicated region
        $region33: #{tpu_custom_call.1} parent=11 // pred_check
          %p331 = pneg %p189
        $region34: #{tpu_custom_call.1} parent=11 // pred_check_branch
          %333 = sbr.rel (%p331) target = $region36
        $region35: #{tpu_custom_call.1} parent=11 // pred_region
          _
        $region36: #{tpu_custom_call.1} parent=11 // pred_fallthru
          _
        // Predicated region
        $region37: #{tpu_custom_call.1} parent=11 // pred_check
          %p334 = pneg %p210
        $region38: #{tpu_custom_call.1} parent=11 // pred_check_branch
          %336 = sbr.rel (%p334) target = $region40
        $region39: #{tpu_custom_call.1} parent=11 // pred_region
          %s338 = ssub.s32 32, 32
          %339 = vsyncadd [#allocation4], %s338
          %s341 = sshll.u32 %s7, 4
          %s342 = int_to_ptr.vmem [resolvable:$true] %s341
          %344 = dma.vmem_to_smem %s342, 32, [#allocation2], [#allocation4]
        $region40: #{tpu_custom_call.1} parent=11 // pred_fallthru
          _
        // Predicated region
        $region41: #{tpu_custom_call.1} parent=11 // pred_check
          %p345 = pneg %p231
        $region42: #{tpu_custom_call.1} parent=11 // pred_check_branch
          %347 = sbr.rel (%p345) target = $region44
        $region43: #{tpu_custom_call.1} parent=11 // pred_region
          %s349 = ssub.s32 16, 16
          %350 = vsyncadd [#allocation6], %s349
          %s352 = sshll.u32 %s8, 4
          %s353 = int_to_ptr.vmem [resolvable:$true] %s352
          %355 = dma.vmem_to_smem %s353, 16, [#allocation5], [#allocation6]
        $region44: #{tpu_custom_call.1} parent=11 // pred_fallthru
          _
        // Predicated region
        $region45: #{tpu_custom_call.1} parent=11 // pred_check
          %p356 = pneg %p252
        $region46: #{tpu_custom_call.1} parent=11 // pred_check_branch
          %358 = sbr.rel (%p356) target = $region48
        $region47: #{tpu_custom_call.1} parent=11 // pred_region
          %s360 = ssub.s32 32, 32
          %361 = vsyncadd [#allocation6], %s360
          %s363 = sshll.u32 %s9, 4
          %s364 = int_to_ptr.vmem [resolvable:$true] %s363
          %366 = dma.vmem_to_smem %s364, 32, [#allocation7], [#allocation6]
        $region48: #{tpu_custom_call.1} parent=11 // pred_fallthru
          _
        // Predicated region
        $region49: #{tpu_custom_call.1} parent=11 // pred_check
          %p367 = pneg %p273
        $region50: #{tpu_custom_call.1} parent=11 // pred_check_branch
          %369 = sbr.rel (%p367) target = $region52
        $region51: #{tpu_custom_call.1} parent=11 // pred_region
          %s371 = ssub.s32 16, 16
          %372 = vsyncadd [#allocation9], %s371
          %s374 = sshll.u32 %s10, 4
          %s375 = int_to_ptr.vmem [resolvable:$true] %s374
          %377 = dma.vmem_to_smem %s375, 16, [#allocation8], [#allocation9]
        $region52: #{tpu_custom_call.1} parent=11 // pred_fallthru
          _
      $region12: #{tpu_custom_call.1} parent=5 // pred_fallthru
        _
      %p378 = scmp.lt.s32.totalorder %s23, 2
      // Predicated region
      $region53: #{tpu_custom_call.1} parent=5 // pred_check
        %p379 = pneg %p378
      $region54: #{tpu_custom_call.1} parent=5 // pred_check_branch
        %381 = sbr.rel (%p379) target = $region56
      $region55: #{tpu_custom_call.1} parent=5 // pred_region
        // Predicated region
        $region57: #{tpu_custom_call.1} parent=55 // pred_check
          %p382 = pneg %p57
        $region58: #{tpu_custom_call.1} parent=55 // pred_check_branch
          %384 = sbr.rel (%p382) target = $region60
        $region59: #{tpu_custom_call.1} parent=55 // pred_region
          %s385 = smul.u32 2, %s31
          %p386 = scmp.lt.s32.totalorder %s30, 1
          %s387 = scalar_select %p386, %s30, 1
          %p388 = scmp.lt.s32.totalorder %s385, 1
          %s389 = scalar_select %p388, %s385, 1
          %s390 = smul.addr %s387, 10
          %s391 = sadd.s32 %s389, %s390
          %s392 = smul.addr %s391, 8
          %s393 = scalar_lea.vmem %s0, %s392
          %s394 = smul.u32 2, %s31
        $region60: #{tpu_custom_call.1} parent=55 // pred_fallthru
          _
      $region56: #{tpu_custom_call.1} parent=5 // pred_fallthru
        _
      %p395 = scmp.le.s32.totalorder 1, %s23
      %p396 = scmp.lt.s32.totalorder %s23, 3
      %p397 = pnand %p395, %p396
      %p398 = pneg %p397
      // Predicated region
      $region61: #{tpu_custom_call.1} parent=5 // pred_check
        _
      $region62: #{tpu_custom_call.1} parent=5 // pred_check_branch
        %400 = sbr.rel (%p397) target = $region64
      $region63: #{tpu_custom_call.1} parent=5 // pred_region
        %s401 = ssub.s32 %s23, 1
        // Predicated region
        $region65: #{tpu_custom_call.1} parent=63 // pred_check
          %p402 = pneg %p210
        $region66: #{tpu_custom_call.1} parent=63 // pred_check_branch
          %404 = sbr.rel (%p402) target = $region68
        $region67: #{tpu_custom_call.1} parent=63 // pred_region
          %405 = dma.done [#allocation4], 32
        $region68: #{tpu_custom_call.1} parent=63 // pred_fallthru
          _
        // Predicated region
        $region69: #{tpu_custom_call.1} parent=63 // pred_check
          %p406 = pneg %p231
        $region70: #{tpu_custom_call.1} parent=63 // pred_check_branch
          %408 = sbr.rel (%p406) target = $region72
        $region71: #{tpu_custom_call.1} parent=63 // pred_region
          %409 = dma.done [#allocation6], 16
        $region72: #{tpu_custom_call.1} parent=63 // pred_fallthru
          _
        // Predicated region
        $region73: #{tpu_custom_call.1} parent=63 // pred_check
          %p410 = pneg %p252
        $region74: #{tpu_custom_call.1} parent=63 // pred_check_branch
          %412 = sbr.rel (%p410) target = $region76
        $region75: #{tpu_custom_call.1} parent=63 // pred_region
          %413 = dma.done [#allocation6], 32
        $region76: #{tpu_custom_call.1} parent=63 // pred_fallthru
          _
        // Predicated region
        $region77: #{tpu_custom_call.1} parent=63 // pred_check
          %p414 = pneg %p273
        $region78: #{tpu_custom_call.1} parent=63 // pred_check_branch
          %416 = sbr.rel (%p414) target = $region80
        $region79: #{tpu_custom_call.1} parent=63 // pred_region
          %417 = dma.done [#allocation9], 16
        $region80: #{tpu_custom_call.1} parent=63 // pred_fallthru
          _
        %418 = sfence
        %s419 = smul.u32 2, %s33
        %p420 = scmp.lt.s32.totalorder %s32, 1
        %s421 = scalar_select %p420, %s32, 1
        %p422 = scmp.lt.s32.totalorder %s419, 1
        %s423 = scalar_select %p422, %s419, 1
        %s424 = smul.addr %s421, 10
        %s425 = sadd.s32 %s423, %s424
        %s426 = smul.addr %s425, 8
        %s427 = scalar_lea.vmem %s0, %s426
        %p428 = pneg %p63
        %p429 = pneg %p60
        %p430 = pneg %p84
        %p431 = pneg %p81
        %p432 = pneg %p105
        %p433 = pneg %p102
        %p434 = pneg %p126
        %p435 = pneg %p123
        %p436 = pneg %p147
        %p437 = pneg %p144
        %p438 = pneg %p168
        %p439 = pneg %p165
        %p440 = pneg %p189
        %p441 = pneg %p186
        %p442 = pneg %p210
        %p443 = pneg %p207
        %p444 = pneg %p231
        %p445 = pneg %p228
        %p446 = pneg %p252
        %p447 = pneg %p249
        %p448 = pneg %p273
        %p449 = pneg %p270
        %p450 = pneg %p301
        %p451 = pneg %p298
        %s452 = sand.u32 %s288, 1
        %s453 = scalar_lea.sflag [#allocation3], %s452
        %s454 = sand.u32 %s288, 1
        %s455 = smul.addr %s454, 4
        %s456 = scalar_lea.vmem [#allocation10], %s455
        %s457 = smul.u32 2, %s33
        %p458 = scmp.lt.s32.totalorder %s32, 1
        %s459 = scalar_select %p458, %s32, 1
        %p460 = scmp.lt.s32.totalorder %s457, 1
        %s461 = scalar_select %p460, %s457, 1
        %s462 = smul.addr %s459, 10
        %s463 = sadd.s32 %s461, %s462
        %s464 = smul.addr %s463, 8
        %s465 = scalar_lea.vmem %s0, %s464
        %s466 = smul.u32 2, %s33
        %s467 = smul.u32 2, %s33
        %v469 = vld [vmem:[%s465] sm:$0xff]
        %v470 = vld [vmem:[%s465 + $0x8] sm:$0xff]
        %v471 = vld [vmem:[%s465 + $0x10] sm:$0xff]
        %v472 = vld [vmem:[%s465 + $0x18] sm:$0xff]
        %v473 = vld [vmem:[%s465 + $0x20] sm:$0xff]
        %v474 = vld [vmem:[%s465 + $0x28] sm:$0xff]
        %v475 = vld [vmem:[%s465 + $0x30] sm:$0xff]
        %v476 = vld [vmem:[%s465 + $0x38] sm:$0xff]
        %v477 = vld [vmem:[%s465 + $0x40] sm:$0x3]
        %v478 = vld [vmem:[%s465 + $0x48] sm:$0x3]
        %v479 = vpack.c.bf16 %v471, %v469
        %v480 = vpack.c.bf16 %v472, %v470
        %v481 = vpack.c.bf16 %v475, %v473
        %v482 = vpack.c.bf16 %v476, %v474
        %v483 = vpack.c.bf16 %v477, %v477
        %v484 = vpack.c.bf16 %v478, %v478
        %v485 = vld [vmem:[%s1] sm:$0xf]
        %v486 = vld [vmem:[%s1 + $0x4] sm:$0xf]
        %v487 = vld [vmem:[%s1 + $0x8] sm:$0xf]
        %v488 = vld [vmem:[%s1 + $0xc] sm:$0xf]
        %v489 = vld [vmem:[%s2] sm:$0xff]
        %v490 = vld [vmem:[%s2 + $0x8] sm:$0xff]
        %v491 = vld [vmem:[%s2 + $0x10] sm:$0xff]
        %v492 = vld [vmem:[%s2 + $0x18] sm:$0xff]
        %494 = vset.pattern.permute.xlu0 0
        %495 = vperm.xlu0 %494, %v489
        %v496 = vpop.permute.xlu0 %495
        %499 = vset.pattern.permute.xlu0 0
        %500 = vperm.xlu0 %499, %v490
        %v501 = vpop.permute.xlu0 %500
        %504 = vset.pattern.permute.xlu0 0
        %505 = vperm.xlu0 %504, %v491
        %v506 = vpop.permute.xlu0 %505
        %509 = vset.pattern.permute.xlu0 0
        %510 = vperm.xlu0 %509, %v492
        %v511 = vpop.permute.xlu0 %510
        %v517 = vunpack.c.l.b16 %v485
        %v518 = vunpack.c.l.b16 %v486
        %v519 = vunpack.c.l.b16 %v487
        %v520 = vunpack.c.l.b16 %v488
        %v521 = vpack.c.b16 %v518, %v517
        %v522 = vpack.c.b16 %v520, %v519
        %vm523 = vcmask 277504
        %v525 = vsel %vm523, %v521, 0
        %v528 = vsel %vm523, %v522, 0
        %vm530 = vcmask 1040384
        %v532 = vsel %vm530, %v483, 0
        %v535 = vsel %vm530, %v484, 0
        %537 = vmatprep.subr.bf16.mxu0 %v480
        %538 = vmatpush1.bf16.msra.mxu0 %v479
        %539 = vmatprep.subr.bf16.mxu0 %v482
        %540 = vmatpush1.bf16.msra.mxu0 %v481
        %541 = vmatprep.subr.bf16.mxu0 %v535
        %542 = vmatpush1.bf16.msra.mxu0 %v532
        %543 = vmatprep.subr.bf16.mxu0 0
        %544 = vmatpush1.bf16.msra.mxu0 0
        %545 = vmatprep.subr.bf16.mxu0 0
        %546 = vmatpush1.bf16.msra.mxu0 0
        %547 = vmatprep.subr.bf16.mxu0 0
        %548 = vmatpush1.bf16.msra.mxu0 0
        %549 = vmatprep.subr.bf16.mxu0 0
        %550 = vmatpush1.bf16.msra.mxu0 0
        %551 = vmatprep.subr.bf16.mxu0 0
        %552 = vmatpush1.bf16.msra.mxu0 0
        %553 = vmatprep.subr.bf16.mxu0 0
        %554 = vmatpush1.bf16.msra.mxu0 0
        %555 = vmatprep.subr.bf16.mxu0 0
        %556 = vmatpush1.bf16.msra.mxu0 0
        %557 = vmatprep.subr.bf16.mxu0 0
        %558 = vmatpush1.bf16.msra.mxu0 0
        %559 = vmatprep.subr.bf16.mxu0 0
        %560 = vmatpush1.bf16.msra.mxu0 0
        %561 = vmatprep.subr.bf16.mxu0 0
        %562 = vmatpush1.bf16.msra.mxu0 0
        %563 = vmatprep.subr.bf16.mxu0 0
        %564 = vmatpush1.bf16.msra.mxu0 0
        %565 = vmatprep.subr.bf16.mxu0 0
        %566 = vmatpush1.bf16.msra.mxu0 0
        %567 = vmatprep.subr.bf16.mxu0 0
        %568 = vmatpush1.bf16.msra.mxu0 0
        %569 = vmatprep.mubr.bf16.mxu0 0
        %570 = vmatmul.mubr.bf16.gmra.mrb[0].mxu0 %v525
        %v571 = vpop.f32.mrb[0].mxu0
        %v572 = vadd.f32 %v496, %v571
        %v573 = vpop.f32.mrb[0].mxu0
        %v574 = vadd.f32 %v496, %v573
        %v575 = vpop.f32.mrb[0].mxu0
        %v576 = vadd.f32 %v501, %v575
        %v577 = vpop.f32.mrb[0].mxu0
        %v578 = vadd.f32 %v501, %v577
        %579 = vmatprep.mubr.bf16.mxu0 0
        %580 = vmatmul.mubr.bf16.gmra.mrb[0].mxu0 %v528
        %v581 = vpop.f32.mrb[0].mxu0
        %v582 = vadd.f32 %v506, %v581
        %v583 = vpop.f32.mrb[0].mxu0
        %v584 = vadd.f32 %v506, %v583
        %v585 = vpop.f32.mrb[0].mxu0
        %v586 = vadd.f32 %v511, %v585
        %v587 = vpop.f32.mrb[0].mxu0
        %v588 = vadd.f32 %v511, %v587
        %589 = vdwg.mxu0
        %v590 = vmul.f32 %v572, 0.01
        %v591 = vmul.f32 %v574, 0.01
        %v592 = vmul.f32 %v576, 0.01
        %v593 = vmul.f32 %v578, 0.01
        %v594 = vmul.f32 %v582, 0.01
        %v595 = vmul.f32 %v584, 0.01
        %v596 = vmul.f32 %v586, 0.01
        %v597 = vmul.f32 %v588, 0.01
        %v598 = vmax.f32 %v572, %v590
        %v599 = vmax.f32 %v574, %v591
        %v600 = vmax.f32 %v576, %v592
        %v601 = vmax.f32 %v578, %v593
        %v602 = vmax.f32 %v582, %v594
        %v603 = vmax.f32 %v584, %v595
        %v604 = vmax.f32 %v586, %v596
        %v605 = vmax.f32 %v588, %v597
        %v606 = vld [vmem:[%s3] sm:$0xf]
        %v607 = vld [vmem:[%s3 + $0x4] sm:$0xf]
        %v608 = vpack.c.bf16 %v600, %v598
        %v609 = vpack.c.bf16 %v601, %v599
        %v610 = vpack.c.bf16 %v604, %v602
        %v611 = vpack.c.bf16 %v605, %v603
        %v612 = vld [vmem:[%s4] sm:$0xff]
        %v613 = vld [vmem:[%s4 + $0x8] sm:$0xff]
        %615 = vset.pattern.permute.xlu0 0
        %616 = vperm.xlu0 %615, %v612
        %v617 = vpop.permute.xlu0 %616
        %620 = vset.pattern.permute.xlu0 0
        %621 = vperm.xlu0 %620, %v613
        %v622 = vpop.permute.xlu0 %621
        %v626 = vunpack.c.l.b16 %v606
        %v627 = vunpack.c.l.b16 %v607
        %v628 = vpack.c.b16 %v627, %v626
        %vm629 = vcmask 261120
        %v631 = vsel %vm629, %v628, 0
        %633 = vmatprep.subr.bf16.mxu0 %v609
        %634 = vmatpush1.bf16.msra.mxu0 %v608
        %635 = vmatprep.subr.bf16.mxu0 %v611
        %636 = vmatpush1.bf16.msra.mxu0 %v610
        %637 = vmatprep.subr.bf16.mxu0 0
        %638 = vmatpush1.bf16.msra.mxu0 0
        %639 = vmatprep.subr.bf16.mxu0 0
        %640 = vmatpush1.bf16.msra.mxu0 0
        %641 = vmatprep.subr.bf16.mxu0 0
        %642 = vmatpush1.bf16.msra.mxu0 0
        %643 = vmatprep.subr.bf16.mxu0 0
        %644 = vmatpush1.bf16.msra.mxu0 0
        %645 = vmatprep.subr.bf16.mxu0 0
        %646 = vmatpush1.bf16.msra.mxu0 0
        %647 = vmatprep.subr.bf16.mxu0 0
        %648 = vmatpush1.bf16.msra.mxu0 0
        %649 = vmatprep.subr.bf16.mxu0 0
        %650 = vmatpush1.bf16.msra.mxu0 0
        %651 = vmatprep.subr.bf16.mxu0 0
        %652 = vmatpush1.bf16.msra.mxu0 0
        %653 = vmatprep.subr.bf16.mxu0 0
        %654 = vmatpush1.bf16.msra.mxu0 0
        %655 = vmatprep.subr.bf16.mxu0 0
        %656 = vmatpush1.bf16.msra.mxu0 0
        %657 = vmatprep.subr.bf16.mxu0 0
        %658 = vmatpush1.bf16.msra.mxu0 0
        %659 = vmatprep.subr.bf16.mxu0 0
        %660 = vmatpush1.bf16.msra.mxu0 0
        %661 = vmatprep.subr.bf16.mxu0 0
        %662 = vmatpush1.bf16.msra.mxu0 0
        %663 = vmatprep.subr.bf16.mxu0 0
        %664 = vmatpush1.bf16.msra.mxu0 0
        %665 = vmatprep.mubr.bf16.mxu0 0
        %666 = vmatmul.mubr.bf16.gmra.mrb[0].mxu0 %v631
        %v667 = vpop.f32.mrb[0].mxu0
        %v668 = vadd.f32 %v617, %v667
        %v669 = vpop.f32.mrb[0].mxu0
        %v670 = vadd.f32 %v617, %v669
        %v671 = vpop.f32.mrb[0].mxu0
        %v672 = vadd.f32 %v622, %v671
        %v673 = vpop.f32.mrb[0].mxu0
        %v674 = vadd.f32 %v622, %v673
        %675 = vdwg.mxu0
        %v676 = vmul.f32 %v668, 0.01
        %v677 = vmul.f32 %v670, 0.01
        %v678 = vmul.f32 %v672, 0.01
        %v679 = vmul.f32 %v674, 0.01
        %v680 = vmax.f32 %v668, %v676
        %v681 = vmax.f32 %v670, %v677
        %v682 = vmax.f32 %v672, %v678
        %v683 = vmax.f32 %v674, %v679
        %v684 = vld [vmem:[%s5] sm:$0xf]
        %v685 = vpack.c.bf16 %v682, %v680
        %v686 = vpack.c.bf16 %v683, %v681
        %v687 = vld [vmem:[%s6] sm:$0xff]
        %689 = vset.pattern.permute.xlu0 0
        %690 = vperm.xlu0 %689, %v687
        %v691 = vpop.permute.xlu0 %690
        %vm693 = vcmask 130048
        %v695 = vsel %vm693, %v684, 0
        %697 = vmatprep.subr.bf16.mxu0 %v686
        %698 = vmatpush1.bf16.msra.mxu0 %v685
        %699 = vmatprep.subr.bf16.mxu0 0
        %700 = vmatpush1.bf16.msra.mxu0 0
        %701 = vmatprep.subr.bf16.mxu0 0
        %702 = vmatpush1.bf16.msra.mxu0 0
        %703 = vmatprep.subr.bf16.mxu0 0
        %704 = vmatpush1.bf16.msra.mxu0 0
        %705 = vmatprep.subr.bf16.mxu0 0
        %706 = vmatpush1.bf16.msra.mxu0 0
        %707 = vmatprep.subr.bf16.mxu0 0
        %708 = vmatpush1.bf16.msra.mxu0 0
        %709 = vmatprep.subr.bf16.mxu0 0
        %710 = vmatpush1.bf16.msra.mxu0 0
        %711 = vmatprep.subr.bf16.mxu0 0
        %712 = vmatpush1.bf16.msra.mxu0 0
        %713 = vmatprep.subr.bf16.mxu0 0
        %714 = vmatpush1.bf16.msra.mxu0 0
        %715 = vmatprep.subr.bf16.mxu0 0
        %716 = vmatpush1.bf16.msra.mxu0 0
        %717 = vmatprep.subr.bf16.mxu0 0
        %718 = vmatpush1.bf16.msra.mxu0 0
        %719 = vmatprep.subr.bf16.mxu0 0
        %720 = vmatpush1.bf16.msra.mxu0 0
        %721 = vmatprep.subr.bf16.mxu0 0
        %722 = vmatpush1.bf16.msra.mxu0 0
        %723 = vmatprep.subr.bf16.mxu0 0
        %724 = vmatpush1.bf16.msra.mxu0 0
        %725 = vmatprep.subr.bf16.mxu0 0
        %726 = vmatpush1.bf16.msra.mxu0 0
        %727 = vmatprep.subr.bf16.mxu0 0
        %728 = vmatpush1.bf16.msra.mxu0 0
        %729 = vmatprep.mubr.bf16.mxu0 0
        %730 = vmatmul.mubr.bf16.gmra.mrb[0].mxu0 %v695
        %v731 = vpop.f32.mrb[0].mxu0
        %v732 = vadd.f32 %v691, %v731
        %v733 = vpop.f32.mrb[0].mxu0
        %v734 = vadd.f32 %v691, %v733
        %v735 = vpop.f32.mrb[0].mxu0
        %v736 = vpop.f32.mrb[0].mxu0
        %737 = vdwg.mxu0
        %v738 = vmul.f32 %v732, 0.01
        %v739 = vmul.f32 %v734, 0.01
        %v740 = vmax.f32 %v732, %v738
        %v741 = vmax.f32 %v734, %v739
        %s742 = sld [smem:[#allocation2]]
        %v743 = vstv %s742
        %v744 = vmul.f32 %v743, %v740
        %v745 = vmul.f32 %v743, %v741
        %s746 = sld [smem:[#allocation2 + $0x1]]
        %v747 = vstv %s746
        %v748 = vmul.f32 %v747, %v740
        %v749 = vmul.f32 %v747, %v741
        %v752 = vrot.slane %v748, 1
        %v753 = vrot.slane %v749, 1
        %v756 = vadd.f32 %v744, %v752
        %v757 = vadd.f32 %v745, %v753
        %s758 = sld [smem:[#allocation2 + $0x2]]
        %v759 = vstv %s758
        %v760 = vmul.f32 %v759, %v740
        %v761 = vmul.f32 %v759, %v741
        %v764 = vrot.slane %v760, 2
        %v765 = vrot.slane %v761, 2
        %v768 = vadd.f32 %v756, %v764
        %v769 = vadd.f32 %v757, %v765
        %s770 = sld [smem:[#allocation2 + $0x3]]
        %v771 = vstv %s770
        %v772 = vmul.f32 %v771, %v740
        %v773 = vmul.f32 %v771, %v741
        %v776 = vrot.slane %v772, 3
        %v777 = vrot.slane %v773, 3
        %v780 = vadd.f32 %v768, %v776
        %v781 = vadd.f32 %v769, %v777
        %s782 = sld [smem:[#allocation2 + $0x4]]
        %v783 = vstv %s782
        %v784 = vmul.f32 %v783, %v740
        %v785 = vmul.f32 %v783, %v741
        %v788 = vrot.slane %v784, 4
        %v789 = vrot.slane %v785, 4
        %v792 = vadd.f32 %v780, %v788
        %v793 = vadd.f32 %v781, %v789
        %s794 = sld [smem:[#allocation2 + $0x5]]
        %v795 = vstv %s794
        %v796 = vmul.f32 %v795, %v740
        %v797 = vmul.f32 %v795, %v741
        %v800 = vrot.slane %v796, 5
        %v801 = vrot.slane %v797, 5
        %v804 = vadd.f32 %v792, %v800
        %v805 = vadd.f32 %v793, %v801
        %s806 = sld [smem:[#allocation2 + $0x6]]
        %v807 = vstv %s806
        %v808 = vmul.f32 %v807, %v740
        %v809 = vmul.f32 %v807, %v741
        %v812 = vrot.slane %v808, 6
        %v813 = vrot.slane %v809, 6
        %v816 = vadd.f32 %v804, %v812
        %v817 = vadd.f32 %v805, %v813
        %s818 = sld [smem:[#allocation2 + $0x7]]
        %v819 = vstv %s818
        %v820 = vmul.f32 %v819, %v740
        %v821 = vmul.f32 %v819, %v741
        %v824 = vrot.slane %v820, 7
        %v825 = vrot.slane %v821, 7
        %v828 = vadd.f32 %v816, %v824
        %v829 = vadd.f32 %v817, %v825
        %s830 = sld [smem:[#allocation5]]
        %v831 = vstv %s830
        %v832 = vadd.f32 %v828, %v831
        %v833 = vadd.f32 %v829, %v831
        %v834 = vmul.f32 %v832, 0.01
        %v835 = vmul.f32 %v833, 0.01
        %v836 = vmax.f32 %v832, %v834
        %v837 = vmax.f32 %v833, %v835
        %s838 = sld [smem:[#allocation2 + $0x80]]
        %v839 = vstv %s838
        %v840 = vmul.f32 %v839, %v740
        %v841 = vmul.f32 %v839, %v741
        %s842 = sld [smem:[#allocation2 + $0x81]]
        %v843 = vstv %s842
        %v844 = vmul.f32 %v843, %v740
        %v845 = vmul.f32 %v843, %v741
        %v848 = vrot.slane %v844, 1
        %v849 = vrot.slane %v845, 1
        %v852 = vadd.f32 %v840, %v848
        %v853 = vadd.f32 %v841, %v849
        %s854 = sld [smem:[#allocation2 + $0x82]]
        %v855 = vstv %s854
        %v856 = vmul.f32 %v855, %v740
        %v857 = vmul.f32 %v855, %v741
        %v860 = vrot.slane %v856, 2
        %v861 = vrot.slane %v857, 2
        %v864 = vadd.f32 %v852, %v860
        %v865 = vadd.f32 %v853, %v861
        %s866 = sld [smem:[#allocation2 + $0x83]]
        %v867 = vstv %s866
        %v868 = vmul.f32 %v867, %v740
        %v869 = vmul.f32 %v867, %v741
        %v872 = vrot.slane %v868, 3
        %v873 = vrot.slane %v869, 3
        %v876 = vadd.f32 %v864, %v872
        %v877 = vadd.f32 %v865, %v873
        %s878 = sld [smem:[#allocation2 + $0x84]]
        %v879 = vstv %s878
        %v880 = vmul.f32 %v879, %v740
        %v881 = vmul.f32 %v879, %v741
        %v884 = vrot.slane %v880, 4
        %v885 = vrot.slane %v881, 4
        %v888 = vadd.f32 %v876, %v884
        %v889 = vadd.f32 %v877, %v885
        %s890 = sld [smem:[#allocation2 + $0x85]]
        %v891 = vstv %s890
        %v892 = vmul.f32 %v891, %v740
        %v893 = vmul.f32 %v891, %v741
        %v896 = vrot.slane %v892, 5
        %v897 = vrot.slane %v893, 5
        %v900 = vadd.f32 %v888, %v896
        %v901 = vadd.f32 %v889, %v897
        %s902 = sld [smem:[#allocation2 + $0x86]]
        %v903 = vstv %s902
        %v904 = vmul.f32 %v903, %v740
        %v905 = vmul.f32 %v903, %v741
        %v908 = vrot.slane %v904, 6
        %v909 = vrot.slane %v905, 6
        %v912 = vadd.f32 %v900, %v908
        %v913 = vadd.f32 %v901, %v909
        %s914 = sld [smem:[#allocation2 + $0x87]]
        %v915 = vstv %s914
        %v916 = vmul.f32 %v915, %v740
        %v917 = vmul.f32 %v915, %v741
        %v920 = vrot.slane %v916, 7
        %v921 = vrot.slane %v917, 7
        %v924 = vadd.f32 %v912, %v920
        %v925 = vadd.f32 %v913, %v921
        %s926 = sld [smem:[#allocation5 + $0x1]]
        %v927 = vstv %s926
        %v928 = vadd.f32 %v924, %v927
        %v929 = vadd.f32 %v925, %v927
        %v930 = vmul.f32 %v928, 0.01
        %v931 = vmul.f32 %v929, 0.01
        %v932 = vmax.f32 %v928, %v930
        %v933 = vmax.f32 %v929, %v931
        %s934 = sld [smem:[#allocation7]]
        %v935 = vstv %s934
        %v936 = vmul.f32 %v935, %v836
        %v937 = vmul.f32 %v935, %v837
        %s938 = sld [smem:[#allocation7 + $0x1]]
        %v939 = vstv %s938
        %v940 = vmul.f32 %v939, %v932
        %v941 = vmul.f32 %v939, %v933
        %v942 = vadd.f32 %v936, %v940
        %v943 = vadd.f32 %v937, %v941
        %s944 = sld [smem:[#allocation8]]
        %v945 = vstv %s944
        %v946 = vadd.f32 %v942, %v945
        %v947 = vadd.f32 %v943, %v945
        %s948 = sld [smem:[#allocation7 + $0x80]]
        %v949 = vstv %s948
        %v950 = vmul.f32 %v949, %v836
        %v951 = vmul.f32 %v949, %v837
        %s952 = sld [smem:[#allocation7 + $0x81]]
        %v953 = vstv %s952
        %v954 = vmul.f32 %v953, %v932
        %v955 = vmul.f32 %v953, %v933
        %v956 = vadd.f32 %v950, %v954
        %v957 = vadd.f32 %v951, %v955
        %s958 = sld [smem:[#allocation8 + $0x1]]
        %v959 = vstv %s958
        %v960 = vadd.f32 %v956, %v959
        %v961 = vadd.f32 %v957, %v959
        %v964 = vrot.slane %v960, 7
        %v965 = vrot.slane %v961, 7
        %v968 = vsel %vm530, %v946, %v964
        %v969 = vsel %vm530, %v947, %v965
        %v972 = vcombine.low %v968, %v969
        %v974 = vunpack.c.l.s4 1983009808
        %v975 = vunpack.c.0.s8 %v974
        %v976 = vlaneseq
        %v977 = vshrl.u32 %v976, 7
        %v978 = vsub.s32 %v975, %v977
        %v979 = vrot.slane %v972, %v978
        %981 = vst [vmem:[%s456] sm:$0xf] %v979
        %s982 = sand.u32 %s288, 1
        %s983 = scalar_lea.sflag [#allocation3], %s982
        %s984 = sand.u32 %s288, 1
        %s985 = smul.addr %s984, 4
        %s986 = scalar_lea.vmem [#allocation10], %s985
        // Predicated region
        $region81: #{tpu_custom_call.1} parent=63 // pred_check
          %p987 = pneg %p298
        $region82: #{tpu_custom_call.1} parent=63 // pred_check_branch
          %989 = sbr.rel (%p987) target = $region84
        $region83: #{tpu_custom_call.1} parent=63 // pred_region
          %s990 = smul.u32 2, %s33
          %s992 = ssub.s32 64, 64
          %993 = vsyncadd %s983, %s992
          %s994 = smul.addr %s32, 2
          %s995 = sadd.s32 %s990, %s994
          %s996 = smul.addr %s995, 32
          %s997 = scalar_lea.hbm %s11, %s996
          %s999 = sshll.u32 %s986, 4
          %s1000 = int_to_ptr.vmem [resolvable:$true] %s999
          %1002 = dma.vmem_to_hbm [thread:$0]  %s1000, 64, %s997, %s983
        $region84: #{tpu_custom_call.1} parent=63 // pred_fallthru
          _
      $region64: #{tpu_custom_call.1} parent=5 // pred_fallthru
        _
      %p1003 = scmp.le.s32.totalorder 2, %s23
      // Predicated region
      $region85: #{tpu_custom_call.1} parent=5 // pred_check
        %p1004 = pneg %p1003
      $region86: #{tpu_custom_call.1} parent=5 // pred_check_branch
        %1006 = sbr.rel (%p1004) target = $region88
      $region87: #{tpu_custom_call.1} parent=5 // pred_region
        %s1007 = ssub.s32 %s23, 2
        // Predicated region
        $region89: #{tpu_custom_call.1} parent=87 // pred_check
          %p1008 = pneg %p304
        $region90: #{tpu_custom_call.1} parent=87 // pred_check_branch
          %1010 = sbr.rel (%p1008) target = $region92
        $region91: #{tpu_custom_call.1} parent=87 // pred_region
          %s1011 = sand.u32 %s289, 1
          %s1012 = scalar_lea.sflag [#allocation3], %s1011
          %s1013 = sand.u32 %s289, 1
          %s1014 = smul.addr %s1013, 4
          %s1015 = scalar_lea.vmem [#allocation10], %s1014
          %1016 = dma.done %s1012, 64
        $region92: #{tpu_custom_call.1} parent=87 // pred_fallthru
          _
      $region88: #{tpu_custom_call.1} parent=5 // pred_fallthru
        _
    $region6: #{tpu_custom_call.1} parent=1 // loop_footer
      %s27 = sadd.s32 1, %s23
    $region7: #{tpu_custom_call.1} parent=1 // loop_footer_branch
      %22 = sbr.rel target = $region3
    $region8: #{tpu_custom_call.1} parent=1 // loop_exit
      _
    %1017 = vsyncpa [#allocation3], 1
    %s1018 = scalar_lea.sflag [#allocation3], 1
    %1019 = vsyncpa %s1018, 1
    %1020 = vsyncpa [#allocation4], 1
    %s1021 = scalar_lea.sflag [#allocation4], 1
    %1022 = vsyncpa %s1021, 1
    %1023 = vsyncpa [#allocation6], 1
    %1024 = vsyncpa [#allocation9], 1

</llo_original>
